<compile_context>
chip_gen: v5e
topology: v5e:2x2
jax: 0.10.0
libtpu: 0.0.40
codegen_flags: <defaults>
</compile_context>

<pallas_src>
import jax
import jax.numpy as jnp
from jax.experimental import pallas as pl
from jax.experimental.pallas import tpu as pltpu

_LANE = 128


def _round_up(x, m):
    return (x + m - 1) // m * m


def _vmem_cap_bytes():
    """Chip-aware VMEM request cap (75% of physical), conservative fallback."""
    try:
        info = pltpu.get_tpu_info()
        phys = int(getattr(info, "vmem_capacity_bytes"))
        if phys <= 0:
            raise ValueError
    except Exception:
        phys = 64 * 1024 * 1024  # v7x per-TC physical VMEM (smallest of v5e/v6e/v7x)
    return int(phys * 0.75)


def dqn_mlp_kernel(x_ref, w1_ref, b1_ref, w2_ref, b2_ref, w3_ref, b3_ref, o_ref):
    # fc1 + ReLU  (MXU accumulates in f32; bias/ReLU stay in f32 on the VPU)
    h1 = jnp.dot(x_ref[...], w1_ref[...], preferred_element_type=jnp.float32)
    h1 = jnp.maximum(h1 + b1_ref[...], 0.0)
    # fc2 + ReLU
    h2 = jnp.dot(h1.astype(w2_ref.dtype), w2_ref[...],
                 preferred_element_type=jnp.float32)
    h2 = jnp.maximum(h2 + b2_ref[...], 0.0)
    # fc3 (no activation) — compact act_dim-wide output store (no lane padding)
    out = jnp.dot(h2.astype(w3_ref.dtype), w3_ref[...],
                  preferred_element_type=jnp.float32)
    o_ref[...] = (out + b3_ref[...]).astype(o_ref.dtype)


def dqn_forward(x, params, *, block_b=8192):
    """Pallas forward pass of DQNNet. x: (B, obs_dim). Returns (B, act_dim)."""
    w1, b1, w2, b2, w3, b3 = params
    B, obs_dim = x.shape
    hid = w1.shape[1]        # padded hidden (multiple of 128)
    act_dim = w3.shape[1]    # true action dim (compact output)

    x_item = x.dtype.itemsize
    w_item = w1.dtype.itemsize
    weights_bytes = (obs_dim * hid + hid * hid + hid * act_dim) * w_item
    bias_bytes = (2 * hid + act_dim) * b1.dtype.itemsize

    def vmem_est(t):
        return (2 * t * obs_dim * x_item          # double-buffered x blocks
                + 2 * t * act_dim * x_item        # double-buffered out blocks
                + 2 * (weights_bytes + bias_bytes)  # resident weights/biases
                + 2 * t * hid * 4 + t * act_dim * 4)  # f32 intermediates

    cap = _vmem_cap_bytes()

    # Batch tile selection: one block for small B; otherwise grid over B with a
    # ragged last block (rows are independent; Pallas masks out-of-range stores,
    # so no jnp.pad / extra HBM pass is needed).
    tb = min(B, block_b)
    while tb > 512 and 2 * vmem_est(tb) > cap:
        tb //= 2
    if tb != B:
        tb = max(8, (tb // 8) * 8)   # second-last block dim: multiple of 8
    grid_b = pl.cdiv(B, tb)
    vmem_limit = int(min(max(2 * vmem_est(tb), 16 * 1024 * 1024), cap))

    out = pl.pallas_call(
        dqn_mlp_kernel,
        out_shape=jax.ShapeDtypeStruct((B, act_dim), x.dtype),
        grid=(grid_b,),
        in_specs=[
            pl.BlockSpec((tb, obs_dim), lambda i: (i, 0)),   # x: streams over batch
            pl.BlockSpec((obs_dim, hid), lambda i: (0, 0)),  # w1: resident
            pl.BlockSpec((1, hid), lambda i: (0, 0)),        # b1
            pl.BlockSpec((hid, hid), lambda i: (0, 0)),      # w2
            pl.BlockSpec((1, hid), lambda i: (0, 0)),        # b2
            pl.BlockSpec((hid, act_dim), lambda i: (0, 0)),  # w3 (compact out dim)
            pl.BlockSpec((1, act_dim), lambda i: (0, 0)),    # b3
        ],
        out_specs=pl.BlockSpec((tb, act_dim), lambda i: (i, 0)),
        compiler_params=pltpu.CompilerParams(
            # batch rows are independent -> grid axis is parallel (v7x may shard
            # it across its 2 TensorCores; no-op on v5e/v6e).
            dimension_semantics=("parallel",),
            vmem_limit_bytes=vmem_limit,
        ),
    )(x, w1, b1, w2, b2, w3, b3)
    return out


def init_dqn_params(key, obs_dim, act_dim, hidden_size=64,
                    weight_dtype=jnp.bfloat16):
    """nn.Linear-style init (uniform +/- 1/sqrt(fan_in)), stored transposed as
    (in, out). Hidden dims zero-padded to 128 lanes (padded lanes stay exactly
    zero through ReLU); the output dim stays compact (= act_dim). Biases f32."""
    hid_pad = _round_up(hidden_size, _LANE)
    keys = jax.random.split(key, 6)

    def linear(kw, kb, fan_in, fan_out, in_pad, out_pad):
        bound = 1.0 / float(fan_in) ** 0.5
        w = jax.random.uniform(kw, (fan_in, fan_out), jnp.float32, -bound, bound)
        b = jax.random.uniform(kb, (1, fan_out), jnp.float32, -bound, bound)
        w_full = jnp.zeros((in_pad, out_pad), jnp.float32).at[:fan_in, :fan_out].set(w)
        b_full = jnp.zeros((1, out_pad), jnp.float32).at[:, :fan_out].set(b)
        return w_full.astype(weight_dtype), b_full  # bias kept f32 (VPU f32 path)

    w1, b1 = linear(keys[0], keys[1], obs_dim, hidden_size, obs_dim, hid_pad)
    w2, b2 = linear(keys[2], keys[3], hidden_size, hidden_size, hid_pad, hid_pad)
    w3, b3 = linear(keys[4], keys[5], hidden_size, act_dim, hid_pad, act_dim)
    return (w1, b1, w2, b2, w3, b3)


def dqn_forward_ref(x, params):
    """Pure-JAX f32 reference (padded hidden lanes are exact zeros)."""
    w1, b1, w2, b2, w3, b3 = [p.astype(jnp.float32) for p in params]
    x = x.astype(jnp.float32)
    h = jnp.maximum(x @ w1 + b1, 0.0)
    h = jnp.maximum(h @ w2 + b2, 0.0)
    return h @ w3 + b3


if __name__ == "__main__":
    key = jax.random.PRNGKey(0)
    obs_dim, act_dim, hidden_size = 8, 4, 64
    pkey, xkey, xkey2 = jax.random.split(key, 3)

    # 1) f32 path, tiny acting-sized batch (single block, no grid iteration)
    params_f32 = init_dqn_params(pkey, obs_dim, act_dim, hidden_size,
                                 weight_dtype=jnp.float32)
    x_small = jax.random.normal(xkey, (2, obs_dim), dtype=jnp.float32)
    out_small = jax.block_until_ready(dqn_forward(x_small, params_f32))
    ref_small = dqn_forward_ref(x_small, params_f32)
    assert out_small.shape == (2, act_dim)
    assert jnp.allclose(out_small, ref_small, atol=1e-5, rtol=1e-5)

    # 2) f32 path, larger batch exercising the grid with a ragged last block
    x_big = jax.random.normal(xkey2, (300, obs_dim), dtype=jnp.float32)
    out_big = jax.block_until_ready(dqn_forward(x_big, params_f32, block_b=128))
    ref_big = dqn_forward_ref(x_big, params_f32)
    assert out_big.shape == (300, act_dim)
    assert jnp.allclose(out_big, ref_big, atol=1e-5, rtol=1e-5)

    # 3) default bf16 path (bf16 weights/activations/output, f32 accumulation)
    params_bf16 = init_dqn_params(pkey, obs_dim, act_dim, hidden_size)
    out_bf16 = jax.block_until_ready(
        dqn_forward(x_big.astype(jnp.bfloat16), params_bf16, block_b=128))
    assert out_bf16.shape == (300, act_dim)
    assert out_bf16.dtype == jnp.bfloat16
    assert jnp.allclose(out_bf16.astype(jnp.float32),
                        dqn_forward_ref(x_big, params_bf16), atol=0.1, rtol=0.1)

    print("KERNEL_OK")
</pallas_src>

<mosaic_0001>
module attributes {stable_mosaic.version = 11 : i64} {
  func.func @dqn_mlp_kernel(%arg0: i32, %arg1: memref<2x8xf32, #tpu.memory_space<vmem>>, %arg2: memref<8x128xf32, #tpu.memory_space<vmem>>, %arg3: memref<1x128xf32, #tpu.memory_space<vmem>>, %arg4: memref<128x128xf32, #tpu.memory_space<vmem>>, %arg5: memref<1x128xf32, #tpu.memory_space<vmem>>, %arg6: memref<128x4xf32, #tpu.memory_space<vmem>>, %arg7: memref<1x4xf32, #tpu.memory_space<vmem>>, %arg8: memref<2x4xf32, #tpu.memory_space<vmem>>) attributes {dimension_semantics = [#tpu.dimension_semantics<parallel>], iteration_bounds = array<i64: 1>, scalar_prefetch = 0 : i64, scratch_operands = 0 : i64, tpu.core_type = #tpu.core_type<tc>, window_params = [{transform_indices = @transform_0, window_bounds = array<i64: 2, 8>}, {pipeline_mode = #tpu.pipeline_mode<synchronous>, transform_indices = @transform_1, window_bounds = array<i64: 8, 128>}, {pipeline_mode = #tpu.pipeline_mode<synchronous>, transform_indices = @transform_2, window_bounds = array<i64: 1, 128>}, {pipeline_mode = #tpu.pipeline_mode<synchronous>, transform_indices = @transform_3, window_bounds = array<i64: 128, 128>}, {pipeline_mode = #tpu.pipeline_mode<synchronous>, transform_indices = @transform_4, window_bounds = array<i64: 1, 128>}, {pipeline_mode = #tpu.pipeline_mode<synchronous>, transform_indices = @transform_5, window_bounds = array<i64: 128, 4>}, {pipeline_mode = #tpu.pipeline_mode<synchronous>, transform_indices = @transform_6, window_bounds = array<i64: 1, 4>}, {transform_indices = @transform_7, window_bounds = array<i64: 2, 4>}]} {
    %c0 = arith.constant 0 : index
    %c0_0 = arith.constant 0 : index
    %0 = vector.load %arg1[%c0, %c0_0] : memref<2x8xf32, #tpu.memory_space<vmem>>, vector<2x8xf32>
    %c0_1 = arith.constant 0 : index
    %c0_2 = arith.constant 0 : index
    %1 = vector.load %arg2[%c0_1, %c0_2] : memref<8x128xf32, #tpu.memory_space<vmem>>, vector<8x128xf32>
    %cst = arith.constant dense<0.000000e+00> : vector<2x128xf32>
    %2 = tpu.matmul %0, %1, %cst {dimension_numbers = #tpu.dot_dimension_numbers<[1], [0], [0], [1], [0, 0, 1, 1], [], []>} : vector<2x8xf32>, vector<8x128xf32>, vector<2x128xf32> -> vector<2x128xf32>
    %c0_3 = arith.constant 0 : index
    %c0_4 = arith.constant 0 : index
    %3 = vector.load %arg3[%c0_3, %c0_4] : memref<1x128xf32, #tpu.memory_space<vmem>>, vector<1x128xf32>
    %4 = vector.broadcast %3 : vector<1x128xf32> to vector<2x128xf32>
    %5 = arith.addf %2, %4 : vector<2x128xf32>
    %cst_5 = arith.constant 0.000000e+00 : f32
    %6 = vector.broadcast %cst_5 : f32 to vector<2x128xf32>
    %7 = arith.maximumf %5, %6 : vector<2x128xf32>
    %c0_6 = arith.constant 0 : index
    %c0_7 = arith.constant 0 : index
    %8 = vector.load %arg4[%c0_6, %c0_7] : memref<128x128xf32, #tpu.memory_space<vmem>>, vector<128x128xf32>
    %cst_8 = arith.constant dense<0.000000e+00> : vector<2x128xf32>
    %9 = tpu.matmul %7, %8, %cst_8 {dimension_numbers = #tpu.dot_dimension_numbers<[1], [0], [0], [1], [0, 0, 1, 1], [], []>} : vector<2x128xf32>, vector<128x128xf32>, vector<2x128xf32> -> vector<2x128xf32>
    %c0_9 = arith.constant 0 : index
    %c0_10 = arith.constant 0 : index
    %10 = vector.load %arg5[%c0_9, %c0_10] : memref<1x128xf32, #tpu.memory_space<vmem>>, vector<1x128xf32>
    %11 = vector.broadcast %10 : vector<1x128xf32> to vector<2x128xf32>
    %12 = arith.addf %9, %11 : vector<2x128xf32>
    %cst_11 = arith.constant 0.000000e+00 : f32
    %13 = vector.broadcast %cst_11 : f32 to vector<2x128xf32>
    %14 = arith.maximumf %12, %13 : vector<2x128xf32>
    %c0_12 = arith.constant 0 : index
    %c0_13 = arith.constant 0 : index
    %15 = vector.load %arg6[%c0_12, %c0_13] : memref<128x4xf32, #tpu.memory_space<vmem>>, vector<128x4xf32>
    %cst_14 = arith.constant dense<0.000000e+00> : vector<2x4xf32>
    %16 = tpu.matmul %14, %15, %cst_14 {dimension_numbers = #tpu.dot_dimension_numbers<[1], [0], [0], [1], [0, 0, 1, 1], [], []>} : vector<2x128xf32>, vector<128x4xf32>, vector<2x4xf32> -> vector<2x4xf32>
    %c0_15 = arith.constant 0 : index
    %c0_16 = arith.constant 0 : index
    %17 = vector.load %arg7[%c0_15, %c0_16] : memref<1x4xf32, #tpu.memory_space<vmem>>, vector<1x4xf32>
    %18 = vector.broadcast %17 : vector<1x4xf32> to vector<2x4xf32>
    %19 = arith.addf %16, %18 : vector<2x4xf32>
    %c0_17 = arith.constant 0 : index
    %c0_18 = arith.constant 0 : index
    %20 = vector.load %arg8[%c0_17, %c0_18] : memref<2x4xf32, #tpu.memory_space<vmem>>, vector<2x4xf32>
    tpu.vector_store %arg8[%c0_17, %c0_18], %19 {strides = array<i32>} : memref<2x4xf32, #tpu.memory_space<vmem>>, vector<2x4xf32>,
    return
  }
  func.func @transform_0(%arg0: i32) -> (i32, i32) {
    %c0_i32 = arith.constant 0 : i32
    %c0_i32_0 = arith.constant 0 : i32
    return %arg0, %c0_i32 : i32, i32
  }
  func.func @transform_1(%arg0: i32) -> (i32, i32) {
    %c0_i32 = arith.constant 0 : i32
    %c0_i32_0 = arith.constant 0 : i32
    %c0_i32_1 = arith.constant 0 : i32
    return %c0_i32, %c0_i32_0 : i32, i32
  }
  func.func @transform_2(%arg0: i32) -> (i32, i32) {
    %c0_i32 = arith.constant 0 : i32
    %c0_i32_0 = arith.constant 0 : i32
    %c0_i32_1 = arith.constant 0 : i32
    return %c0_i32, %c0_i32_0 : i32, i32
  }
  func.func @transform_3(%arg0: i32) -> (i32, i32) {
    %c0_i32 = arith.constant 0 : i32
    %c0_i32_0 = arith.constant 0 : i32
    %c0_i32_1 = arith.constant 0 : i32
    return %c0_i32, %c0_i32_0 : i32, i32
  }
  func.func @transform_4(%arg0: i32) -> (i32, i32) {
    %c0_i32 = arith.constant 0 : i32
    %c0_i32_0 = arith.constant 0 : i32
    %c0_i32_1 = arith.constant 0 : i32
    return %c0_i32, %c0_i32_0 : i32, i32
  }
  func.func @transform_5(%arg0: i32) -> (i32, i32) {
    %c0_i32 = arith.constant 0 : i32
    %c0_i32_0 = arith.constant 0 : i32
    %c0_i32_1 = arith.constant 0 : i32
    return %c0_i32, %c0_i32_0 : i32, i32
  }
  func.func @transform_6(%arg0: i32) -> (i32, i32) {
    %c0_i32 = arith.constant 0 : i32
    %c0_i32_0 = arith.constant 0 : i32
    %c0_i32_1 = arith.constant 0 : i32
    return %c0_i32, %c0_i32_0 : i32, i32
  }
  func.func @transform_7(%arg0: i32) -> (i32, i32) {
    %c0_i32 = arith.constant 0 : i32
    %c0_i32_0 = arith.constant 0 : i32
    return %arg0, %c0_i32 : i32, i32
  }
}

</mosaic_0001>

<llo_original>
// kernel: tpu_custom_call.1
$region0: #{tpu_custom_call.1}
  #allocation0 [shape = 'u32[]', space=smem, size = 0x4, offset = 0x4, fixed_abs, tag = 'smem constant byte address 0x4 - core index']
  #allocation1 [shape = 'u32[72,128]{1,0:T(1,128)}', space=vmem, size = 0x9000, scoped, tag = 'internal scratch']
  %s0 = inlined_call_operand.vmem [shape: f32[2,8], index: 0, kind: input, shape index: {}]
  %s1 = inlined_call_operand.hbm [shape: f32[8,128], index: 1, kind: input, shape index: {}]
  %s2 = inlined_call_operand.vmem [shape: f32[1,128], index: 2, kind: input, shape index: {}]
  %s3 = inlined_call_operand.vmem [shape: f32[128,128], index: 3, kind: input, shape index: {}]
  %s4 = inlined_call_operand.vmem [shape: f32[1,128], index: 4, kind: input, shape index: {}]
  %s5 = inlined_call_operand.vmem [shape: f32[128,4], index: 5, kind: input, shape index: {}]
  %s6 = inlined_call_operand.vmem [shape: f32[1,4], index: 6, kind: input, shape index: {}]
  %s7 = inlined_call_operand.hbm [shape: f32[2,4], index: 7, kind: output, shape index: {}]
  %s8 = sld [smem:[#allocation0]]
  $region42: #{tpu_custom_call.1} parent=0
    _
  %s10 = ssub.s32 1, %s8
  %s11 = scalar_select 0, %s10, %s8
  $region1: #{tpu_custom_call.1} parent=0
    #allocation2 [shape = 'u8[4096]{0}', space=vmem, size = 0x1000, scoped, tag = 'input window, operand 1, single buffered']
    #allocation3 [shape = 's32[1]{0}', space=sflag, size = 0x4, scoped, tag = 'scoped memory for tpu_custom_call.1']
    #allocation4 [shape = 's32[1]{0}', space=sflag, size = 0x4, scoped, tag = 'scoped memory for tpu_custom_call.1']
    #allocation5 [shape = 'u8[1024]{0}', space=vmem, size = 0x400, scoped, tag = 'output window, operand 0, single buffered']
    %12 = vsyncpa [#allocation3], 0
    %13 = vsyncpa [#allocation4], 0
    // Predicated region
    $region2: #{tpu_custom_call.1} parent=1 // pred_check
      _
    $region3: #{tpu_custom_call.1} parent=1 // pred_check_branch
      %15 = sbr.rel (0) target = $region5
    $region4: #{tpu_custom_call.1} parent=1 // pred_region
      _
    $region5: #{tpu_custom_call.1} parent=1 // pred_fallthru
      _
    // Predicated region
    $region6: #{tpu_custom_call.1} parent=1 // pred_check
      _
    $region7: #{tpu_custom_call.1} parent=1 // pred_check_branch
      %17 = sbr.rel (0) target = $region9
    $region8: #{tpu_custom_call.1} parent=1 // pred_region
      %19 = vsyncadd [#allocation3], 0
      %s21 = sshll.u32 %s1, 4
      %s22 = int_to_ptr.hbm [resolvable:$true] %s21
      %s23 = sshll.u32 [#allocation2], 4
      %s24 = int_to_ptr.vmem [resolvable:$true] %s23
      %26 = dma.hbm_to_vmem [thread:$0]  %s22, 128, %s24, [#allocation3]
    $region9: #{tpu_custom_call.1} parent=1 // pred_fallthru
      _
    // Predicated region
    $region10: #{tpu_custom_call.1} parent=1 // pred_check
      _
    $region11: #{tpu_custom_call.1} parent=1 // pred_check_branch
      %28 = sbr.rel (0) target = $region13
    $region12: #{tpu_custom_call.1} parent=1 // pred_region
      _
    $region13: #{tpu_custom_call.1} parent=1 // pred_fallthru
      _
    // Predicated region
    $region14: #{tpu_custom_call.1} parent=1 // pred_check
      _
    $region15: #{tpu_custom_call.1} parent=1 // pred_check_branch
      %30 = sbr.rel (0) target = $region17
    $region16: #{tpu_custom_call.1} parent=1 // pred_region
      _
    $region17: #{tpu_custom_call.1} parent=1 // pred_fallthru
      _
    // Predicated region
    $region18: #{tpu_custom_call.1} parent=1 // pred_check
      _
    $region19: #{tpu_custom_call.1} parent=1 // pred_check_branch
      %32 = sbr.rel (0) target = $region21
    $region20: #{tpu_custom_call.1} parent=1 // pred_region
      _
    $region21: #{tpu_custom_call.1} parent=1 // pred_fallthru
      _
    // Predicated region
    $region22: #{tpu_custom_call.1} parent=1 // pred_check
      _
    $region23: #{tpu_custom_call.1} parent=1 // pred_check_branch
      %34 = sbr.rel (0) target = $region25
    $region24: #{tpu_custom_call.1} parent=1 // pred_region
      _
    $region25: #{tpu_custom_call.1} parent=1 // pred_fallthru
      _
    // Predicated region
    $region26: #{tpu_custom_call.1} parent=1 // pred_check
      _
    $region27: #{tpu_custom_call.1} parent=1 // pred_check_branch
      %36 = sbr.rel (0) target = $region29
    $region28: #{tpu_custom_call.1} parent=1 // pred_region
      _
    $region29: #{tpu_custom_call.1} parent=1 // pred_fallthru
      _
    // Predicated region
    $region30: #{tpu_custom_call.1} parent=1 // pred_check
      _
    $region31: #{tpu_custom_call.1} parent=1 // pred_check_branch
      %38 = sbr.rel (0) target = $region33
    $region32: #{tpu_custom_call.1} parent=1 // pred_region
      %40 = dma.done [#allocation3], 128
    $region33: #{tpu_custom_call.1} parent=1 // pred_fallthru
      _
    %v41 = vld [vmem:[%s0] sm:$0x3]
    %v42 = vld [vmem:[#allocation2] sm:$0xff]
    %v43 = vld [vmem:[%s2] sm:$0x1]
    %v45 = vperm.slane %v43, 0
    %vm47 = vcmask 64512
    %v49 = vsel %vm47, %v41, 0
    %51 = vmatpush.msra.mxu0 0.0
    %52 = vmatpush.msra.mxu0 0.0
    %53 = vmatpush.msra.mxu0 0.0
    %54 = vmatpush.msra.mxu0 0.0
    %55 = vmatpush.msra.mxu0 0.0
    %56 = vmatpush.msra.mxu0 0.0
    %57 = vmatpush.msra.mxu0 0.0
    %58 = vmatpush.msra.mxu0 0.0
    %59 = vmatpush.msra.mxu0 0.0
    %60 = vmatpush.msra.mxu0 0.0
    %61 = vmatpush.msra.mxu0 0.0
    %62 = vmatpush.msra.mxu0 0.0
    %63 = vmatpush.msra.mxu0 0.0
    %64 = vmatpush.msra.mxu0 0.0
    %65 = vmatpush.msra.mxu0 0.0
    %66 = vmatpush.msra.mxu0 %v42
    %67 = vmatmul.f32.gmra.mxu0 %v49
    %v68 = vpop.f32.mrf.mxu0
    %v69 = vadd.f32 %v45, %v68
    %70 = vdwg.mxu0
    %v71 = vmax.f32 %v69, 0.0
    %v72 = vld [vmem:[%s3] sm:$0xff]
    %v73 = vld [vmem:[%s3 + $0x8] sm:$0xff]
    %v74 = vld [vmem:[%s3 + $0x10] sm:$0xff]
    %v75 = vld [vmem:[%s3 + $0x18] sm:$0xff]
    %v76 = vld [vmem:[%s3 + $0x20] sm:$0xff]
    %v77 = vld [vmem:[%s3 + $0x28] sm:$0xff]
    %v78 = vld [vmem:[%s3 + $0x30] sm:$0xff]
    %v79 = vld [vmem:[%s3 + $0x38] sm:$0xff]
    %v80 = vld [vmem:[%s3 + $0x40] sm:$0xff]
    %v81 = vld [vmem:[%s3 + $0x48] sm:$0xff]
    %v82 = vld [vmem:[%s3 + $0x50] sm:$0xff]
    %v83 = vld [vmem:[%s3 + $0x58] sm:$0xff]
    %v84 = vld [vmem:[%s3 + $0x60] sm:$0xff]
    %v85 = vld [vmem:[%s3 + $0x68] sm:$0xff]
    %v86 = vld [vmem:[%s3 + $0x70] sm:$0xff]
    %v87 = vld [vmem:[%s3 + $0x78] sm:$0xff]
    %v88 = vld [vmem:[%s4] sm:$0x1]
    %v90 = vperm.slane %v88, 0
    %92 = vmatpush.msra.mxu0 %v87
    %93 = vmatpush.msra.mxu0 %v86
    %94 = vmatpush.msra.mxu0 %v85
    %95 = vmatpush.msra.mxu0 %v84
    %96 = vmatpush.msra.mxu0 %v83
    %97 = vmatpush.msra.mxu0 %v82
    %98 = vmatpush.msra.mxu0 %v81
    %99 = vmatpush.msra.mxu0 %v80
    %100 = vmatpush.msra.mxu0 %v79
    %101 = vmatpush.msra.mxu0 %v78
    %102 = vmatpush.msra.mxu0 %v77
    %103 = vmatpush.msra.mxu0 %v76
    %104 = vmatpush.msra.mxu0 %v75
    %105 = vmatpush.msra.mxu0 %v74
    %106 = vmatpush.msra.mxu0 %v73
    %107 = vmatpush.msra.mxu0 %v72
    %108 = vmatmul.f32.gmra.mxu0 %v71
    %v109 = vpop.f32.mrf.mxu0
    %v110 = vadd.f32 %v90, %v109
    %111 = vdwg.mxu0
    %v112 = vmax.f32 %v110, 0.0
    %v113 = vld [vmem:[%s5] sm:$0xff]
    %v114 = vld [vmem:[%s5 + $0x8] sm:$0xff]
    %v115 = vld [vmem:[%s5 + $0x10] sm:$0xff]
    %v116 = vld [vmem:[%s5 + $0x18] sm:$0xff]
    %v117 = vld [vmem:[%s5 + $0x20] sm:$0xff]
    %v118 = vld [vmem:[%s5 + $0x28] sm:$0xff]
    %v119 = vld [vmem:[%s5 + $0x30] sm:$0xff]
    %v120 = vld [vmem:[%s5 + $0x38] sm:$0xff]
    %v121 = vld [vmem:[%s5 + $0x40] sm:$0xff]
    %v122 = vld [vmem:[%s5 + $0x48] sm:$0xff]
    %v123 = vld [vmem:[%s5 + $0x50] sm:$0xff]
    %v124 = vld [vmem:[%s5 + $0x58] sm:$0xff]
    %v125 = vld [vmem:[%s5 + $0x60] sm:$0xff]
    %v126 = vld [vmem:[%s5 + $0x68] sm:$0xff]
    %v127 = vld [vmem:[%s5 + $0x70] sm:$0xff]
    %v128 = vld [vmem:[%s5 + $0x78] sm:$0xff]
    %v129 = vld [vmem:[%s6] sm:$0x1]
    %v131 = vperm.slane %v129, 0
    %133 = vmatpush.msra.mxu0 %v128
    %134 = vmatpush.msra.mxu0 %v127
    %135 = vmatpush.msra.mxu0 %v126
    %136 = vmatpush.msra.mxu0 %v125
    %137 = vmatpush.msra.mxu0 %v124
    %138 = vmatpush.msra.mxu0 %v123
    %139 = vmatpush.msra.mxu0 %v122
    %140 = vmatpush.msra.mxu0 %v121
    %141 = vmatpush.msra.mxu0 %v120
    %142 = vmatpush.msra.mxu0 %v119
    %143 = vmatpush.msra.mxu0 %v118
    %144 = vmatpush.msra.mxu0 %v117
    %145 = vmatpush.msra.mxu0 %v116
    %146 = vmatpush.msra.mxu0 %v115
    %147 = vmatpush.msra.mxu0 %v114
    %148 = vmatpush.msra.mxu0 %v113
    %149 = vmatmul.f32.gmra.mxu0 %v112
    %v150 = vpop.f32.mrf.mxu0
    %v151 = vadd.f32 %v131, %v150
    %152 = vdwg.mxu0
    %vm153 = vcmask 25600
    %154 = vst.msk [vmem:[#allocation5] sm:$0x3] %vm153, %v151
    // Predicated region
    $region34: #{tpu_custom_call.1} parent=1 // pred_check
      _
    $region35: #{tpu_custom_call.1} parent=1 // pred_check_branch
      %156 = sbr.rel (0) target = $region37
    $region36: #{tpu_custom_call.1} parent=1 // pred_region
      %158 = vsyncadd [#allocation4], 0
      %s160 = sshll.u32 [#allocation5], 4
      %s161 = int_to_ptr.vmem [resolvable:$true] %s160
      %s162 = sshll.u32 %s7, 4
      %s163 = int_to_ptr.hbm [resolvable:$true] %s162
      %165 = dma.vmem_to_hbm [thread:$0]  %s161, 32, %s163, [#allocation4]
    $region37: #{tpu_custom_call.1} parent=1 // pred_fallthru
      _
    // Predicated region
    $region38: #{tpu_custom_call.1} parent=1 // pred_check
      _
    $region39: #{tpu_custom_call.1} parent=1 // pred_check_branch
      %167 = sbr.rel (0) target = $region41
    $region40: #{tpu_custom_call.1} parent=1 // pred_region
      %169 = dma.done [#allocation4], 32
    $region41: #{tpu_custom_call.1} parent=1 // pred_fallthru
      _
    %170 = vsyncpa [#allocation3], 1
    %171 = vsyncpa [#allocation4], 1

</llo_original>
